<compile_context>
chip_gen: v5e
topology: v5e:2x2
jax: 0.10.0
libtpu: 0.0.40
codegen_flags: <defaults>
</compile_context>

<pallas_src>
import jax
import jax.numpy as jnp
from jax.experimental import pallas as pl
from jax.experimental.pallas import tpu as pltpu

BN_EPS = 1e-5
LANE = 128
HALF = LANE // 2


# -------------------- host-side folding / padding helpers --------------------

def _rup(n, m):
    return ((n + m - 1) // m) * m


def _cdiv(a, b):
    return (a + b - 1) // b


def _pad2(a, rows, cols):
    out = jnp.zeros((rows, cols), a.dtype)
    return out.at[: a.shape[0], : a.shape[1]].set(a)


def _fold_bn_linear(w, b, g, beta, m, v):
    """Fold eval BatchNorm1d (running stats) into the following Linear.

    torch: y = bn(x) @ w.T + b,  bn(x) = (x - m) * rsqrt(v + eps) * g + beta
    Returns (w_f, b_f) laid out (in, out):  y = x @ w_f + b_f
    """
    s = g * jax.lax.rsqrt(v + BN_EPS)          # (in,)
    t = beta - m * s                           # (in,)
    wt = w.T.astype(jnp.float32)               # (in, out)
    return s[:, None] * wt, t @ wt + b.astype(jnp.float32)


def _fold_mlp(params):
    """Fold bn1/bn2 into fc1/fc2; keep bn3 as a (scale, shift) affine."""
    w1, b1 = _fold_bn_linear(params["w1"], params["b1"], params["bn1_g"],
                             params["bn1_b"], params["bn1_m"], params["bn1_v"])
    w2, b2 = _fold_bn_linear(params["w2"], params["b2"], params["bn2_g"],
                             params["bn2_b"], params["bn2_m"], params["bn2_v"])
    s3 = params["bn3_g"] * jax.lax.rsqrt(params["bn3_v"] + BN_EPS)
    t3 = params["bn3_b"] - params["bn3_m"] * s3
    return dict(w1=w1, b1=b1, w2=w2, b2=b2, s3=s3, t3=t3,
                w3=params["w3"].T.astype(jnp.float32),
                b3=params["b3"].astype(jnp.float32))


def _pick_tile_b(B, row_bytes, *, cap=1024, vmem_budget=24 << 20):
    """Batch tile: as big as the VMEM budget allows (cap 1024 rows), but >= 2 balanced
    grid steps whenever B > 8 so both v7x TensorCores get work.  Returns (tile, Bp)."""
    B8 = _rup(max(B, 1), 8)
    fit = (vmem_budget // (2 * max(row_bytes, 1))) // 8 * 8   # double-buffered streams
    cap = max(8, min(cap, fit))
    if B8 <= 8:
        return 8, B8
    n_steps = max(2, _cdiv(B8, cap))
    tile = _rup(_cdiv(B8, n_steps), 8)
    return tile, tile * n_steps


def _full_spec(a):
    # Parameter arrays: whole array resident, same block every grid step.
    return pl.BlockSpec(a.shape, lambda i: (0,) * a.ndim)


# -------------------- kernel bodies --------------------

def _mm(a, w):
    # Operands in the weight dtype (bf16 MXU path by default), f32 accumulation.
    return jnp.dot(a.astype(w.dtype), w, preferred_element_type=jnp.float32)


def _act(h, slope):
    if slope == 0.0:
        return jnp.maximum(h, 0.0)            # ReLU
    return jnp.where(h >= 0, h, slope * h)    # LeakyReLU


def _mlp_block(x, w1, w2, w3, b1, b2, s3, t3, b3, slope):
    """(bn1+fc1) -> act -> (bn2+fc2) -> act -> bn3 affine -> fc3  (BN folded)."""
    h = _act(_mm(x, w1) + b1, slope)
    h = _act(_mm(h, w2) + b2, slope)
    rep = h * s3 + t3                          # bn3 (dropout = identity, eval)
    return _mm(rep, w3) + b3, rep


def _make_mlp_kernel(Hp, Op, slope, emit_rep):
    """Single 3-layer MLP (standalone forward / forward_adversary)."""

    def kernel(x_ref, w1_ref, w2_ref, w3_ref, vec_ref, *out_refs):
        vec = vec_ref[...]
        logits, rep = _mlp_block(
            x_ref[...], w1_ref[...], w2_ref[...], w3_ref[...],
            vec[0:1, :Hp], vec[1:2, :Hp], vec[2:3, :Hp], vec[3:4, :Hp],
            vec[4:5, :Op], slope)
        out_refs[0][...] = logits
        if emit_rep:
            out_refs[1][...] = rep

    return kernel


def _make_fused_kernel(Hp, Hap, emit_rep):
    """Predictor + Adversary in one kernel; adversary reads rep from registers.
    Predictor logits land in lanes [0, HALF), adversary logits in [HALF, LANE)."""

    def kernel(x_ref, w1_ref, w2_ref, w3_ref, wa1_ref, wa2_ref, wa3_ref, vec_ref,
               *out_refs):
        vec = vec_ref[...]
        # Predictor (ReLU)
        logits, rep = _mlp_block(
            x_ref[...], w1_ref[...], w2_ref[...], w3_ref[...],
            vec[0:1, :Hp], vec[1:2, :Hp], vec[2:3, :Hp], vec[3:4, :Hp],
            vec[4:5, :HALF], slope=0.0)
        # grad_reverse = identity in forward; Adversary (LeakyReLU 0.01)
        adv, _ = _mlp_block(
            rep, wa1_ref[...], wa2_ref[...], wa3_ref[...],
            vec[8:9, :Hap], vec[9:10, :Hap], vec[10:11, :Hap], vec[11:12, :Hap],
            vec[12:13, :HALF], slope=0.01)
        out_refs[0][:, :HALF] = logits
        out_refs[0][:, HALF:] = adv
        if emit_rep:
            out_refs[1][...] = rep

    return kernel


# -------------------- pallas_call wrappers --------------------

def mlp_forward(x, params, slope, *, return_representation=True,
                mxu_dtype=jnp.bfloat16, tile_b=None):
    """Single network (Predictor or Adversary), BN folded, lane-dense outputs."""
    B, d_in = x.shape
    H = params["w1"].shape[0]       # torch convention: (out, in)
    O = params["w3"].shape[0]
    Hp, Op = _rup(H, LANE), _rup(O, LANE)
    L = max(Hp, Op)

    f = _fold_mlp(params)
    W1 = _pad2(f["w1"], d_in, Hp).astype(mxu_dtype)     # K (= d_in) left unpadded
    W2 = _pad2(f["w2"], Hp, Hp).astype(mxu_dtype)
    W3 = _pad2(f["w3"], Hp, Op).astype(mxu_dtype)
    vec = jnp.zeros((8, L), jnp.float32)
    vec = (vec.at[0, :H].set(f["b1"]).at[1, :H].set(f["b2"])
              .at[2, :H].set(f["s3"]).at[3, :H].set(f["t3"])
              .at[4, :O].set(f["b3"]))

    x_dtype = jnp.dtype(mxu_dtype)
    row_bytes = (d_in * x_dtype.itemsize + Op * 4
                 + (Hp * 4 if return_representation else 0))
    if tile_b is None:
        tile_b, Bp = _pick_tile_b(B, row_bytes)
    else:
        Bp = _rup(_rup(B, 8), tile_b)

    xc = x.astype(x_dtype)
    xp = xc if Bp == B else jnp.zeros((Bp, d_in), x_dtype).at[:B].set(xc)

    args = (xp, W1, W2, W3, vec)
    in_specs = [pl.BlockSpec((tile_b, d_in), lambda i: (i, 0))] + \
               [_full_spec(a) for a in args[1:]]
    out_specs = [pl.BlockSpec((tile_b, Op), lambda i: (i, 0))]
    out_shape = [jax.ShapeDtypeStruct((Bp, Op), jnp.float32)]
    if return_representation:
        out_specs.append(pl.BlockSpec((tile_b, Hp), lambda i: (i, 0)))
        out_shape.append(jax.ShapeDtypeStruct((Bp, Hp), jnp.float32))

    outs = pl.pallas_call(
        _make_mlp_kernel(Hp, Op, slope, return_representation),
        grid=(Bp // tile_b,),
        in_specs=in_specs,
        out_specs=tuple(out_specs),
        out_shape=tuple(out_shape),
        compiler_params=pltpu.CompilerParams(dimension_semantics=("parallel",)),
    )(*args)
    if not isinstance(outs, (list, tuple)):
        outs = (outs,)
    logits = outs[0][:B, :O]
    if return_representation:
        return logits, outs[1][:B, :H]
    return logits


def adversarial_debiasing_fused_forward(x, pred_params, adv_params, *,
                                        return_representation=False,
                                        mxu_dtype=jnp.bfloat16, tile_b=None):
    """One pallas_call computing forward + forward_adversary.

    Returns (logits, adv_logits) or (logits, rep, adv_logits) if return_representation."""
    B, d_in = x.shape
    H = pred_params["w1"].shape[0]
    O = pred_params["w3"].shape[0]
    Ha = adv_params["w1"].shape[0]
    S = adv_params["w3"].shape[0]
    assert adv_params["w1"].shape[1] == H, "adversary input dim must equal predictor hidden dim"
    assert O <= HALF and S <= HALF, "packed-output path needs O,S <= 64"

    Hp, Hap = _rup(H, LANE), _rup(Ha, LANE)
    L = max(Hp, Hap)

    fp = _fold_mlp(pred_params)
    fa = _fold_mlp(adv_params)

    W1 = _pad2(fp["w1"], d_in, Hp).astype(mxu_dtype)     # K (= d_in) left unpadded
    W2 = _pad2(fp["w2"], Hp, Hp).astype(mxu_dtype)
    W3 = _pad2(fp["w3"], Hp, HALF).astype(mxu_dtype)
    WA1 = _pad2(fa["w1"], Hp, Hap).astype(mxu_dtype)
    WA2 = _pad2(fa["w2"], Hap, Hap).astype(mxu_dtype)
    WA3 = _pad2(fa["w3"], Hap, HALF).astype(mxu_dtype)

    # 16 rows: predictor params in sublane tile 0 (rows 0-4), adversary in tile 1 (rows 8-12).
    vec = jnp.zeros((16, L), jnp.float32)
    vec = (vec.at[0, :H].set(fp["b1"]).at[1, :H].set(fp["b2"])
              .at[2, :H].set(fp["s3"]).at[3, :H].set(fp["t3"])
              .at[4, :O].set(fp["b3"])
              .at[8, :Ha].set(fa["b1"]).at[9, :Ha].set(fa["b2"])
              .at[10, :Ha].set(fa["s3"]).at[11, :Ha].set(fa["t3"])
              .at[12, :S].set(fa["b3"]))

    x_dtype = jnp.dtype(mxu_dtype)
    row_bytes = (d_in * x_dtype.itemsize + LANE * 4
                 + (Hp * 4 if return_representation else 0))
    if tile_b is None:
        tile_b, Bp = _pick_tile_b(B, row_bytes)
    else:
        Bp = _rup(_rup(B, 8), tile_b)

    xc = x.astype(x_dtype)
    xp = xc if Bp == B else jnp.zeros((Bp, d_in), x_dtype).at[:B].set(xc)

    args = (xp, W1, W2, W3, WA1, WA2, WA3, vec)
    in_specs = [pl.BlockSpec((tile_b, d_in), lambda i: (i, 0))] + \
               [_full_spec(a) for a in args[1:]]
    out_specs = [pl.BlockSpec((tile_b, LANE), lambda i: (i, 0))]
    out_shape = [jax.ShapeDtypeStruct((Bp, LANE), jnp.float32)]
    if return_representation:
        out_specs.append(pl.BlockSpec((tile_b, Hp), lambda i: (i, 0)))
        out_shape.append(jax.ShapeDtypeStruct((Bp, Hp), jnp.float32))

    outs = pl.pallas_call(
        _make_fused_kernel(Hp, Hap, return_representation),
        grid=(Bp // tile_b,),
        in_specs=in_specs,
        out_specs=tuple(out_specs),
        out_shape=tuple(out_shape),
        compiler_params=pltpu.CompilerParams(dimension_semantics=("parallel",)),
    )(*args)
    if not isinstance(outs, (list, tuple)):
        outs = (outs,)
    packed = outs[0]
    logits = packed[:B, :O]
    adv_logits = packed[:B, HALF:HALF + S]
    if return_representation:
        return logits, outs[1][:B, :H], adv_logits
    return logits, adv_logits


# -------------------- AdversarialDebiasingModel API --------------------

def adversarial_debiasing_forward(x, predictor_params, return_representation=False, **kw):
    """== AdversarialDebiasingModel.forward (Predictor.forward, eval mode)."""
    return mlp_forward(x, predictor_params, slope=0.0,
                       return_representation=return_representation, **kw)   # ReLU


def adversarial_debiasing_forward_adversary(rep, adversary_params, **kw):
    """== AdversarialDebiasingModel.forward_adversary (grad_reverse = identity fwd)."""
    return mlp_forward(rep, adversary_params, slope=0.01,
                       return_representation=False, **kw)                    # LeakyReLU


# -------------------- deterministic parameter init --------------------

def _init_linear(key, fan_in, fan_out):
    bound = 1.0 / jnp.sqrt(jnp.float32(fan_in))
    kw, kb = jax.random.split(key)
    w = jax.random.uniform(kw, (fan_out, fan_in), jnp.float32, -bound, bound)
    b = jax.random.uniform(kb, (fan_out,), jnp.float32, -bound, bound)
    return w, b


def _init_bn(key, d):
    km, kv = jax.random.split(key)
    return {
        "g": jnp.ones((d,), jnp.float32),
        "b": jnp.zeros((d,), jnp.float32),
        "m": 0.1 * jax.random.normal(km, (d,), jnp.float32),
        "v": 1.0 + 0.05 * jax.random.uniform(kv, (d,), jnp.float32),
    }


def init_mlp_params(key, d_in, h, d_out):
    ks = jax.random.split(key, 6)
    w1, b1 = _init_linear(ks[0], d_in, h)
    w2, b2 = _init_linear(ks[1], h, h)
    w3, b3 = _init_linear(ks[2], h, d_out)
    bn1 = _init_bn(ks[3], d_in)
    bn2 = _init_bn(ks[4], h)
    bn3 = _init_bn(ks[5], h)
    return {
        "w1": w1, "b1": b1, "w2": w2, "b2": b2, "w3": w3, "b3": b3,
        "bn1_g": bn1["g"], "bn1_b": bn1["b"], "bn1_m": bn1["m"], "bn1_v": bn1["v"],
        "bn2_g": bn2["g"], "bn2_b": bn2["b"], "bn2_m": bn2["m"], "bn2_v": bn2["v"],
        "bn3_g": bn3["g"], "bn3_b": bn3["b"], "bn3_m": bn3["m"], "bn3_v": bn3["v"],
    }


# -------------------- pure-JAX reference (unfolded BN) --------------------

def _bn_eval(x, g, b, m, v):
    return (x - m) * jax.lax.rsqrt(v + BN_EPS) * g + b


def _ref_mlp(x, p, slope):
    act = (lambda h: jnp.maximum(h, 0.0)) if slope == 0.0 else \
          (lambda h: jnp.where(h >= 0, h, slope * h))
    h = _bn_eval(x, p["bn1_g"], p["bn1_b"], p["bn1_m"], p["bn1_v"])
    h = act(h @ p["w1"].T + p["b1"])
    h = _bn_eval(h, p["bn2_g"], p["bn2_b"], p["bn2_m"], p["bn2_v"])
    h = act(h @ p["w2"].T + p["b2"])
    rep = _bn_eval(h, p["bn3_g"], p["bn3_b"], p["bn3_m"], p["bn3_v"])
    return rep @ p["w3"].T + p["b3"], rep


if __name__ == "__main__":
    key = jax.random.PRNGKey(0)
    k_x, k_pred, k_adv = jax.random.split(key, 3)

    B, INPUT_DIM, HIDDEN_DIM, OUTPUT_DIM, SENSITIVE_DIM = 16, 32, 64, 4, 2

    x = jax.random.normal(k_x, (B, INPUT_DIM), jnp.float32)
    predictor_params = init_mlp_params(k_pred, INPUT_DIM, HIDDEN_DIM, OUTPUT_DIM)
    adversary_params = init_mlp_params(k_adv, HIDDEN_DIM, HIDDEN_DIM, SENSITIVE_DIM)

    # Fused forward + forward_adversary, f32 MXU operands (exactness check).
    logits, rep, adv_logits = adversarial_debiasing_fused_forward(
        x, predictor_params, adversary_params,
        return_representation=True, mxu_dtype=jnp.float32)

    # Fused path with default bf16 MXU operands + no rep writeback (fast path).
    logits_bf, adv_bf = adversarial_debiasing_fused_forward(
        x, predictor_params, adversary_params, return_representation=False)

    # Standalone module API (forward / forward_adversary as separate calls).
    logits2, rep2 = adversarial_debiasing_forward(
        x, predictor_params, return_representation=True, mxu_dtype=jnp.float32)
    adv_logits2 = adversarial_debiasing_forward_adversary(
        rep2, adversary_params, mxu_dtype=jnp.float32)

    jax.block_until_ready((logits, rep, adv_logits, logits_bf, adv_bf,
                           logits2, rep2, adv_logits2))

    assert logits.shape == (B, OUTPUT_DIM)
    assert rep.shape == (B, HIDDEN_DIM)
    assert adv_logits.shape == (B, SENSITIVE_DIM)
    assert logits_bf.shape == (B, OUTPUT_DIM)
    assert adv_bf.shape == (B, SENSITIVE_DIM)

    # Numerical check against an unfolded pure-JAX reference (eval-mode semantics).
    ref_logits, ref_rep = _ref_mlp(x, predictor_params, 0.0)
    ref_adv, _ = _ref_mlp(ref_rep, adversary_params, 0.01)

    for got, ref in ((logits, ref_logits), (rep, ref_rep), (adv_logits, ref_adv),
                     (logits2, ref_logits), (rep2, ref_rep), (adv_logits2, ref_adv)):
        err = float(jnp.max(jnp.abs(got - ref)))
        assert jnp.allclose(got, ref, rtol=2e-3, atol=2e-3), f"f32 max abs err {err}"

    for got, ref in ((logits_bf, ref_logits), (adv_bf, ref_adv)):
        err = float(jnp.max(jnp.abs(got - ref)))
        assert jnp.allclose(got, ref, rtol=5e-2, atol=5e-2), f"bf16 max abs err {err}"

    print("KERNEL_OK")
</pallas_src>

<mosaic_0001>
module attributes {stable_mosaic.version = 11 : i64} {
  func.func @kernel(%arg0: i32, %arg1: memref<8x32xf32, #tpu.memory_space<vmem>>, %arg2: memref<32x128xf32, #tpu.memory_space<vmem>>, %arg3: memref<128x128xf32, #tpu.memory_space<vmem>>, %arg4: memref<128x64xf32, #tpu.memory_space<vmem>>, %arg5: memref<128x128xf32, #tpu.memory_space<vmem>>, %arg6: memref<128x128xf32, #tpu.memory_space<vmem>>, %arg7: memref<128x64xf32, #tpu.memory_space<vmem>>, %arg8: memref<16x128xf32, #tpu.memory_space<vmem>>, %arg9: memref<8x128xf32, #tpu.memory_space<vmem>>, %arg10: memref<8x128xf32, #tpu.memory_space<vmem>>) attributes {dimension_semantics = [#tpu.dimension_semantics<parallel>], iteration_bounds = array<i64: 2>, scalar_prefetch = 0 : i64, scratch_operands = 0 : i64, tpu.core_type = #tpu.core_type<tc>, window_params = [{transform_indices = @transform_0, window_bounds = array<i64: 8, 32>}, {pipeline_mode = #tpu.pipeline_mode<synchronous>, transform_indices = @transform_1, window_bounds = array<i64: 32, 128>}, {pipeline_mode = #tpu.pipeline_mode<synchronous>, transform_indices = @transform_2, window_bounds = array<i64: 128, 128>}, {pipeline_mode = #tpu.pipeline_mode<synchronous>, transform_indices = @transform_3, window_bounds = array<i64: 128, 64>}, {pipeline_mode = #tpu.pipeline_mode<synchronous>, transform_indices = @transform_4, window_bounds = array<i64: 128, 128>}, {pipeline_mode = #tpu.pipeline_mode<synchronous>, transform_indices = @transform_5, window_bounds = array<i64: 128, 128>}, {pipeline_mode = #tpu.pipeline_mode<synchronous>, transform_indices = @transform_6, window_bounds = array<i64: 128, 64>}, {pipeline_mode = #tpu.pipeline_mode<synchronous>, transform_indices = @transform_7, window_bounds = array<i64: 16, 128>}, {transform_indices = @transform_8, window_bounds = array<i64: 8, 128>}, {transform_indices = @transform_9, window_bounds = array<i64: 8, 128>}]} {
    %c0 = arith.constant 0 : index
    %c0_0 = arith.constant 0 : index
    %0 = vector.load %arg8[%c0, %c0_0] : memref<16x128xf32, #tpu.memory_space<vmem>>, vector<16x128xf32>
    %c0_1 = arith.constant 0 : index
    %c0_2 = arith.constant 0 : index
    %1 = vector.load %arg1[%c0_1, %c0_2] : memref<8x32xf32, #tpu.memory_space<vmem>>, vector<8x32xf32>
    %c0_3 = arith.constant 0 : index
    %c0_4 = arith.constant 0 : index
    %2 = vector.load %arg2[%c0_3, %c0_4] : memref<32x128xf32, #tpu.memory_space<vmem>>, vector<32x128xf32>
    %c0_5 = arith.constant 0 : index
    %c0_6 = arith.constant 0 : index
    %3 = vector.load %arg3[%c0_5, %c0_6] : memref<128x128xf32, #tpu.memory_space<vmem>>, vector<128x128xf32>
    %c0_7 = arith.constant 0 : index
    %c0_8 = arith.constant 0 : index
    %4 = vector.load %arg4[%c0_7, %c0_8] : memref<128x64xf32, #tpu.memory_space<vmem>>, vector<128x64xf32>
    %5 = vector.extract_strided_slice %0 {offsets = [0, 0], sizes = [1, 128], strides = [1, 1]} : vector<16x128xf32> to vector<1x128xf32>
    %6 = vector.extract_strided_slice %0 {offsets = [1, 0], sizes = [1, 128], strides = [1, 1]} : vector<16x128xf32> to vector<1x128xf32>
    %7 = vector.extract_strided_slice %0 {offsets = [2, 0], sizes = [1, 128], strides = [1, 1]} : vector<16x128xf32> to vector<1x128xf32>
    %8 = vector.extract_strided_slice %0 {offsets = [3, 0], sizes = [1, 128], strides = [1, 1]} : vector<16x128xf32> to vector<1x128xf32>
    %9 = vector.extract_strided_slice %0 {offsets = [4, 0], sizes = [1, 64], strides = [1, 1]} : vector<16x128xf32> to vector<1x64xf32>
    %cst = arith.constant dense<0.000000e+00> : vector<8x128xf32>
    %10 = tpu.matmul %1, %2, %cst {dimension_numbers = #tpu.dot_dimension_numbers<[1], [0], [0], [1], [0, 0, 1, 1], [], []>} : vector<8x32xf32>, vector<32x128xf32>, vector<8x128xf32> -> vector<8x128xf32>
    %11 = vector.broadcast %5 : vector<1x128xf32> to vector<8x128xf32>
    %12 = arith.addf %10, %11 : vector<8x128xf32>
    %cst_9 = arith.constant 0.000000e+00 : f32
    %13 = vector.broadcast %cst_9 : f32 to vector<8x128xf32>
    %14 = arith.maximumf %12, %13 : vector<8x128xf32>
    %cst_10 = arith.constant dense<0.000000e+00> : vector<8x128xf32>
    %15 = tpu.matmul %14, %3, %cst_10 {dimension_numbers = #tpu.dot_dimension_numbers<[1], [0], [0], [1], [0, 0, 1, 1], [], []>} : vector<8x128xf32>, vector<128x128xf32>, vector<8x128xf32> -> vector<8x128xf32>
    %16 = vector.broadcast %6 : vector<1x128xf32> to vector<8x128xf32>
    %17 = arith.addf %15, %16 : vector<8x128xf32>
    %cst_11 = arith.constant 0.000000e+00 : f32
    %18 = vector.broadcast %cst_11 : f32 to vector<8x128xf32>
    %19 = arith.maximumf %17, %18 : vector<8x128xf32>
    %20 = vector.broadcast %7 : vector<1x128xf32> to vector<8x128xf32>
    %21 = arith.mulf %19, %20 : vector<8x128xf32>
    %22 = vector.broadcast %8 : vector<1x128xf32> to vector<8x128xf32>
    %23 = arith.addf %21, %22 : vector<8x128xf32>
    %cst_12 = arith.constant dense<0.000000e+00> : vector<8x64xf32>
    %24 = tpu.matmul %23, %4, %cst_12 {dimension_numbers = #tpu.dot_dimension_numbers<[1], [0], [0], [1], [0, 0, 1, 1], [], []>} : vector<8x128xf32>, vector<128x64xf32>, vector<8x64xf32> -> vector<8x64xf32>
    %25 = vector.broadcast %9 : vector<1x64xf32> to vector<8x64xf32>
    %26 = arith.addf %24, %25 : vector<8x64xf32>
    %c0_13 = arith.constant 0 : index
    %c0_14 = arith.constant 0 : index
    %27 = vector.load %arg5[%c0_13, %c0_14] : memref<128x128xf32, #tpu.memory_space<vmem>>, vector<128x128xf32>
    %c0_15 = arith.constant 0 : index
    %c0_16 = arith.constant 0 : index
    %28 = vector.load %arg6[%c0_15, %c0_16] : memref<128x128xf32, #tpu.memory_space<vmem>>, vector<128x128xf32>
    %c0_17 = arith.constant 0 : index
    %c0_18 = arith.constant 0 : index
    %29 = vector.load %arg7[%c0_17, %c0_18] : memref<128x64xf32, #tpu.memory_space<vmem>>, vector<128x64xf32>
    %30 = vector.extract_strided_slice %0 {offsets = [8, 0], sizes = [1, 128], strides = [1, 1]} : vector<16x128xf32> to vector<1x128xf32>
    %31 = vector.extract_strided_slice %0 {offsets = [9, 0], sizes = [1, 128], strides = [1, 1]} : vector<16x128xf32> to vector<1x128xf32>
    %32 = vector.extract_strided_slice %0 {offsets = [10, 0], sizes = [1, 128], strides = [1, 1]} : vector<16x128xf32> to vector<1x128xf32>
    %33 = vector.extract_strided_slice %0 {offsets = [11, 0], sizes = [1, 128], strides = [1, 1]} : vector<16x128xf32> to vector<1x128xf32>
    %34 = vector.extract_strided_slice %0 {offsets = [12, 0], sizes = [1, 64], strides = [1, 1]} : vector<16x128xf32> to vector<1x64xf32>
    %cst_19 = arith.constant dense<0.000000e+00> : vector<8x128xf32>
    %35 = tpu.matmul %23, %27, %cst_19 {dimension_numbers = #tpu.dot_dimension_numbers<[1], [0], [0], [1], [0, 0, 1, 1], [], []>} : vector<8x128xf32>, vector<128x128xf32>, vector<8x128xf32> -> vector<8x128xf32>
    %36 = vector.broadcast %30 : vector<1x128xf32> to vector<8x128xf32>
    %37 = arith.addf %35, %36 : vector<8x128xf32>
    %cst_20 = arith.constant 0.000000e+00 : f32
    %38 = vector.broadcast %cst_20 : f32 to vector<8x128xf32>
    %39 = arith.cmpf oge, %37, %38 : vector<8x128xf32>
    %cst_21 = arith.constant 0.00999999977 : f32
    %40 = vector.broadcast %cst_21 : f32 to vector<8x128xf32>
    %41 = arith.mulf %40, %37 : vector<8x128xf32>
    %42 = arith.select %39, %37, %41 : vector<8x128xi1>, vector<8x128xf32>
    %cst_22 = arith.constant dense<0.000000e+00> : vector<8x128xf32>
    %43 = tpu.matmul %42, %28, %cst_22 {dimension_numbers = #tpu.dot_dimension_numbers<[1], [0], [0], [1], [0, 0, 1, 1], [], []>} : vector<8x128xf32>, vector<128x128xf32>, vector<8x128xf32> -> vector<8x128xf32>
    %44 = vector.broadcast %31 : vector<1x128xf32> to vector<8x128xf32>
    %45 = arith.addf %43, %44 : vector<8x128xf32>
    %cst_23 = arith.constant 0.000000e+00 : f32
    %46 = vector.broadcast %cst_23 : f32 to vector<8x128xf32>
    %47 = arith.cmpf oge, %45, %46 : vector<8x128xf32>
    %cst_24 = arith.constant 0.00999999977 : f32
    %48 = vector.broadcast %cst_24 : f32 to vector<8x128xf32>
    %49 = arith.mulf %48, %45 : vector<8x128xf32>
    %50 = arith.select %47, %45, %49 : vector<8x128xi1>, vector<8x128xf32>
    %51 = vector.broadcast %32 : vector<1x128xf32> to vector<8x128xf32>
    %52 = arith.mulf %50, %51 : vector<8x128xf32>
    %53 = vector.broadcast %33 : vector<1x128xf32> to vector<8x128xf32>
    %54 = arith.addf %52, %53 : vector<8x128xf32>
    %cst_25 = arith.constant dense<0.000000e+00> : vector<8x64xf32>
    %55 = tpu.matmul %54, %29, %cst_25 {dimension_numbers = #tpu.dot_dimension_numbers<[1], [0], [0], [1], [0, 0, 1, 1], [], []>} : vector<8x128xf32>, vector<128x64xf32>, vector<8x64xf32> -> vector<8x64xf32>
    %56 = vector.broadcast %34 : vector<1x64xf32> to vector<8x64xf32>
    %57 = arith.addf %55, %56 : vector<8x64xf32>
    %c0_26 = arith.constant 0 : index
    %c0_27 = arith.constant 0 : index
    %58 = vector.load %arg9[%c0_26, %c0_27] : memref<8x128xf32, #tpu.memory_space<vmem>>, vector<8x64xf32>
    tpu.vector_store %arg9[%c0_26, %c0_27], %26 {strides = array<i32>} : memref<8x128xf32, #tpu.memory_space<vmem>>, vector<8x64xf32>,
    %c0_28 = arith.constant 0 : index
    %c64 = arith.constant 64 : index
    %59 = vector.load %arg9[%c0_28, %c64] : memref<8x128xf32, #tpu.memory_space<vmem>>, vector<8x64xf32>
    tpu.vector_store %arg9[%c0_28, %c64], %57 {strides = array<i32>} : memref<8x128xf32, #tpu.memory_space<vmem>>, vector<8x64xf32>,
    %c0_29 = arith.constant 0 : index
    %c0_30 = arith.constant 0 : index
    %60 = vector.load %arg10[%c0_29, %c0_30] : memref<8x128xf32, #tpu.memory_space<vmem>>, vector<8x128xf32>
    tpu.vector_store %arg10[%c0_29, %c0_30], %23 {strides = array<i32>} : memref<8x128xf32, #tpu.memory_space<vmem>>, vector<8x128xf32>,
    return
  }
  func.func @transform_0(%arg0: i32) -> (i32, i32) {
    %c0_i32 = arith.constant 0 : i32
    %c0_i32_0 = arith.constant 0 : i32
    return %arg0, %c0_i32 : i32, i32
  }
  func.func @transform_1(%arg0: i32) -> (i32, i32) {
    %c0_i32 = arith.constant 0 : i32
    %c0_i32_0 = arith.constant 0 : i32
    %c0_i32_1 = arith.constant 0 : i32
    return %c0_i32, %c0_i32_0 : i32, i32
  }
  func.func @transform_2(%arg0: i32) -> (i32, i32) {
    %c0_i32 = arith.constant 0 : i32
    %c0_i32_0 = arith.constant 0 : i32
    %c0_i32_1 = arith.constant 0 : i32
    return %c0_i32, %c0_i32_0 : i32, i32
  }
  func.func @transform_3(%arg0: i32) -> (i32, i32) {
    %c0_i32 = arith.constant 0 : i32
    %c0_i32_0 = arith.constant 0 : i32
    %c0_i32_1 = arith.constant 0 : i32
    return %c0_i32, %c0_i32_0 : i32, i32
  }
  func.func @transform_4(%arg0: i32) -> (i32, i32) {
    %c0_i32 = arith.constant 0 : i32
    %c0_i32_0 = arith.constant 0 : i32
    %c0_i32_1 = arith.constant 0 : i32
    return %c0_i32, %c0_i32_0 : i32, i32
  }
  func.func @transform_5(%arg0: i32) -> (i32, i32) {
    %c0_i32 = arith.constant 0 : i32
    %c0_i32_0 = arith.constant 0 : i32
    %c0_i32_1 = arith.constant 0 : i32
    return %c0_i32, %c0_i32_0 : i32, i32
  }
  func.func @transform_6(%arg0: i32) -> (i32, i32) {
    %c0_i32 = arith.constant 0 : i32
    %c0_i32_0 = arith.constant 0 : i32
    %c0_i32_1 = arith.constant 0 : i32
    return %c0_i32, %c0_i32_0 : i32, i32
  }
  func.func @transform_7(%arg0: i32) -> (i32, i32) {
    %c0_i32 = arith.constant 0 : i32
    %c0_i32_0 = arith.constant 0 : i32
    %c0_i32_1 = arith.constant 0 : i32
    return %c0_i32, %c0_i32_0 : i32, i32
  }
  func.func @transform_8(%arg0: i32) -> (i32, i32) {
    %c0_i32 = arith.constant 0 : i32
    %c0_i32_0 = arith.constant 0 : i32
    return %arg0, %c0_i32 : i32, i32
  }
  func.func @transform_9(%arg0: i32) -> (i32, i32) {
    %c0_i32 = arith.constant 0 : i32
    %c0_i32_0 = arith.constant 0 : i32
    return %arg0, %c0_i32 : i32, i32
  }
}

</mosaic_0001>

<llo_original>
// kernel: tpu_custom_call.1
$region0: #{tpu_custom_call.1}
  #allocation0 [shape = 'u32[]', space=smem, size = 0x4, offset = 0x4, fixed_abs, tag = 'smem constant byte address 0x4 - core index']
  #allocation1 [shape = 'u32[72,128]{1,0:T(1,128)}', space=vmem, size = 0x9000, scoped, tag = 'internal scratch']
  %s0 = inlined_call_operand.vmem [shape: f32[16,32], index: 0, kind: input, shape index: {}]
  %s1 = inlined_call_operand.vmem [shape: f32[32,128], index: 1, kind: input, shape index: {}]
  %s2 = inlined_call_operand.vmem [shape: f32[128,128], index: 2, kind: input, shape index: {}]
  %s3 = inlined_call_operand.vmem [shape: f32[128,64], index: 3, kind: input, shape index: {}]
  %s4 = inlined_call_operand.vmem [shape: f32[128,128], index: 4, kind: input, shape index: {}]
  %s5 = inlined_call_operand.hbm [shape: f32[128,128], index: 5, kind: input, shape index: {}]
  %s6 = inlined_call_operand.vmem [shape: f32[128,64], index: 6, kind: input, shape index: {}]
  %s7 = inlined_call_operand.vmem [shape: f32[16,128], index: 7, kind: input, shape index: {}]
  %s8 = inlined_call_operand.hbm [shape: f32[16,128], index: 8, kind: output, shape index: {0}]
  %s9 = inlined_call_operand.hbm [shape: f32[16,128], index: 9, kind: output, shape index: {1}]
  %10 = xla_tuple %s8, %s9
  %s11 = sld [smem:[#allocation0]]
  $region77: #{tpu_custom_call.1} parent=0
    _
  %s13 = ssub.s32 1, %s11
  %s14 = scalar_select 0, %s13, %s11
  $region1: #{tpu_custom_call.1} parent=0
    #allocation2 [shape = 'u8[65536]{0}', space=vmem, size = 0x10000, scoped, tag = 'input window, operand 5, single buffered']
    #allocation3 [shape = 's32[2]{0}', space=sflag, size = 0x8, scoped, tag = 'scoped memory for tpu_custom_call.1']
    #allocation4 [shape = 's32[2]{0}', space=sflag, size = 0x8, scoped, tag = 'scoped memory for tpu_custom_call.1']
    #allocation5 [shape = 'u8[8192]{0}', space=vmem, size = 0x2000, scoped, tag = 'output window, operand 0']
    #allocation6 [shape = 'u8[8192]{0}', space=vmem, size = 0x2000, scoped, tag = 'output window, operand 1']
    #allocation7 [shape = 's32[2]{0}', space=sflag, size = 0x8, scoped, tag = 'scoped memory for tpu_custom_call.1']
    %15 = vsyncpa [#allocation3], 0
    %16 = vsyncpa [#allocation4], 0
    %s17 = scalar_lea.sflag [#allocation4], 1
    %18 = vsyncpa %s17, 0
    %19 = vsyncpa [#allocation7], 0
    %s20 = scalar_lea.sflag [#allocation7], 1
    %21 = vsyncpa %s20, 0
    loop: start=0, step=1, limit=4
    $region2: #{tpu_custom_call.1} parent=1 // loop_pre_header
      _
    $region3: #{tpu_custom_call.1} parent=1 // loop_header
      %s23 = sphi 0, %s27
      %p24 = scmp.ge.s32.totalorder %s23, 4
      %s33 = sphi 0, %s35
      %s36 = sphi 0, %s33
      %s37 = sphi 0, %s36
      %s53 = sphi 0, %s37
      %s57 = sphi 0, %s57
      %s59 = sphi 0, %s57
      %s60 = sphi 0, %s59
      %s74 = sphi 0, %s60
      %s78 = sphi 0, %s78
      %s80 = sphi 0, %s78
      %s81 = sphi 0, %s80
      %s95 = sphi 0, %s81
      %s99 = sphi 0, %s99
      %s101 = sphi 0, %s99
      %s102 = sphi 0, %s101
      %s116 = sphi 0, %s102
      %s120 = sphi 0, %s120
      %s122 = sphi 0, %s120
      %s123 = sphi 0, %s122
      %s137 = sphi 0, %s123
      %s141 = sphi 0, %s141
      %s143 = sphi 0, %s141
      %s144 = sphi 0, %s143
      %s158 = sphi 0, %s144
      %s162 = sphi 0, %s162
      %s164 = sphi 0, %s162
      %s165 = sphi 0, %s164
      %s179 = sphi 0, %s165
      %s183 = sphi 0, %s183
      %s185 = sphi 0, %s183
      %s186 = sphi 0, %s185
      %s200 = sphi 0, %s186
      %s206 = sphi 0, %s208
      %s209 = sphi 0, %s206
      %s210 = sphi 0, %s209
      %s226 = sphi 0, %s210
      %s232 = sphi 0, %s234
      %s235 = sphi 0, %s232
      %s236 = sphi 0, %s235
      %s252 = sphi 0, %s236
    $region4: #{tpu_custom_call.1} parent=1 // loop_header_branch
      %26 = sbr.rel (%p24) target = $region8
    $region5: #{tpu_custom_call.1} parent=1 // loop_body
      %s28 = ssub.s32 %s23, 1
      %s29 = ssub.s32 %s23, 2
      %s30 = sadd.s32 %s23, 1
      %s31 = ssub.s32 %s23, %s30
      %p32 = scmp.eq.s32.totalorder %s31, 0
      %s34 = sadd.s32 %s33, 1
      %s35 = scalar_select %p32, %s33, %s34
      %p38 = pneg %p32
      %p39 = scmp.eq.s32.totalorder %s23, 1
      %p40 = por %p38, %p39
      %p41 = scmp.ne.s32.totalorder %s33, %s36
      %p42 = scmp.eq.s32.totalorder %s23, 0
      %p43 = por %p41, %p42
      %p44 = scmp.ne.s32.totalorder %s33, %s36
      %p45 = scmp.eq.s32.totalorder %s28, 1
      %p46 = por %p44, %p45
      %p47 = scmp.ne.s32.totalorder %s36, %s37
      %p48 = scmp.eq.s32.totalorder %s28, 0
      %p49 = por %p47, %p48
      %p50 = scmp.ne.s32.totalorder %s36, %s37
      %p51 = scmp.eq.s32.totalorder %s29, 1
      %p52 = por %p50, %p51
      %p54 = scmp.ne.s32.totalorder %s37, %s53
      %p55 = scmp.eq.s32.totalorder %s29, 0
      %p56 = por %p54, %p55
      %s58 = sadd.s32 %s57, 1
      %p61 = scmp.eq.s32.totalorder %s23, 1
      %p62 = scmp.ne.s32.totalorder %s57, %s59
      %p63 = scmp.eq.s32.totalorder %s23, 0
      %p64 = por %p62, %p63
      %p65 = scmp.ne.s32.totalorder %s57, %s59
      %p66 = scmp.eq.s32.totalorder %s28, 1
      %p67 = por %p65, %p66
      %p68 = scmp.ne.s32.totalorder %s59, %s60
      %p69 = scmp.eq.s32.totalorder %s28, 0
      %p70 = por %p68, %p69
      %p71 = scmp.ne.s32.totalorder %s59, %s60
      %p72 = scmp.eq.s32.totalorder %s29, 1
      %p73 = por %p71, %p72
      %p75 = scmp.ne.s32.totalorder %s60, %s74
      %p76 = scmp.eq.s32.totalorder %s29, 0
      %p77 = por %p75, %p76
      %s79 = sadd.s32 %s78, 1
      %p82 = scmp.eq.s32.totalorder %s23, 1
      %p83 = scmp.ne.s32.totalorder %s78, %s80
      %p84 = scmp.eq.s32.totalorder %s23, 0
      %p85 = por %p83, %p84
      %p86 = scmp.ne.s32.totalorder %s78, %s80
      %p87 = scmp.eq.s32.totalorder %s28, 1
      %p88 = por %p86, %p87
      %p89 = scmp.ne.s32.totalorder %s80, %s81
      %p90 = scmp.eq.s32.totalorder %s28, 0
      %p91 = por %p89, %p90
      %p92 = scmp.ne.s32.totalorder %s80, %s81
      %p93 = scmp.eq.s32.totalorder %s29, 1
      %p94 = por %p92, %p93
      %p96 = scmp.ne.s32.totalorder %s81, %s95
      %p97 = scmp.eq.s32.totalorder %s29, 0
      %p98 = por %p96, %p97
      %s100 = sadd.s32 %s99, 1
      %p103 = scmp.eq.s32.totalorder %s23, 1
      %p104 = scmp.ne.s32.totalorder %s99, %s101
      %p105 = scmp.eq.s32.totalorder %s23, 0
      %p106 = por %p104, %p105
      %p107 = scmp.ne.s32.totalorder %s99, %s101
      %p108 = scmp.eq.s32.totalorder %s28, 1
      %p109 = por %p107, %p108
      %p110 = scmp.ne.s32.totalorder %s101, %s102
      %p111 = scmp.eq.s32.totalorder %s28, 0
      %p112 = por %p110, %p111
      %p113 = scmp.ne.s32.totalorder %s101, %s102
      %p114 = scmp.eq.s32.totalorder %s29, 1
      %p115 = por %p113, %p114
      %p117 = scmp.ne.s32.totalorder %s102, %s116
      %p118 = scmp.eq.s32.totalorder %s29, 0
      %p119 = por %p117, %p118
      %s121 = sadd.s32 %s120, 1
      %p124 = scmp.eq.s32.totalorder %s23, 1
      %p125 = scmp.ne.s32.totalorder %s120, %s122
      %p126 = scmp.eq.s32.totalorder %s23, 0
      %p127 = por %p125, %p126
      %p128 = scmp.ne.s32.totalorder %s120, %s122
      %p129 = scmp.eq.s32.totalorder %s28, 1
      %p130 = por %p128, %p129
      %p131 = scmp.ne.s32.totalorder %s122, %s123
      %p132 = scmp.eq.s32.totalorder %s28, 0
      %p133 = por %p131, %p132
      %p134 = scmp.ne.s32.totalorder %s122, %s123
      %p135 = scmp.eq.s32.totalorder %s29, 1
      %p136 = por %p134, %p135
      %p138 = scmp.ne.s32.totalorder %s123, %s137
      %p139 = scmp.eq.s32.totalorder %s29, 0
      %p140 = por %p138, %p139
      %s142 = sadd.s32 %s141, 1
      %p145 = scmp.eq.s32.totalorder %s23, 1
      %p146 = scmp.ne.s32.totalorder %s141, %s143
      %p147 = scmp.eq.s32.totalorder %s23, 0
      %p148 = por %p146, %p147
      %p149 = scmp.ne.s32.totalorder %s141, %s143
      %p150 = scmp.eq.s32.totalorder %s28, 1
      %p151 = por %p149, %p150
      %p152 = scmp.ne.s32.totalorder %s143, %s144
      %p153 = scmp.eq.s32.totalorder %s28, 0
      %p154 = por %p152, %p153
      %p155 = scmp.ne.s32.totalorder %s143, %s144
      %p156 = scmp.eq.s32.totalorder %s29, 1
      %p157 = por %p155, %p156
      %p159 = scmp.ne.s32.totalorder %s144, %s158
      %p160 = scmp.eq.s32.totalorder %s29, 0
      %p161 = por %p159, %p160
      %s163 = sadd.s32 %s162, 1
      %p166 = scmp.eq.s32.totalorder %s23, 1
      %p167 = scmp.ne.s32.totalorder %s162, %s164
      %p168 = scmp.eq.s32.totalorder %s23, 0
      %p169 = por %p167, %p168
      %p170 = scmp.ne.s32.totalorder %s162, %s164
      %p171 = scmp.eq.s32.totalorder %s28, 1
      %p172 = por %p170, %p171
      %p173 = scmp.ne.s32.totalorder %s164, %s165
      %p174 = scmp.eq.s32.totalorder %s28, 0
      %p175 = por %p173, %p174
      %p176 = scmp.ne.s32.totalorder %s164, %s165
      %p177 = scmp.eq.s32.totalorder %s29, 1
      %p178 = por %p176, %p177
      %p180 = scmp.ne.s32.totalorder %s165, %s179
      %p181 = scmp.eq.s32.totalorder %s29, 0
      %p182 = por %p180, %p181
      %s184 = sadd.s32 %s183, 1
      %p187 = scmp.eq.s32.totalorder %s23, 1
      %p188 = scmp.ne.s32.totalorder %s183, %s185
      %p189 = scmp.eq.s32.totalorder %s23, 0
      %p190 = por %p188, %p189
      %p191 = scmp.ne.s32.totalorder %s183, %s185
      %p192 = scmp.eq.s32.totalorder %s28, 1
      %p193 = por %p191, %p192
      %p194 = scmp.ne.s32.totalorder %s185, %s186
      %p195 = scmp.eq.s32.totalorder %s28, 0
      %p196 = por %p194, %p195
      %p197 = scmp.ne.s32.totalorder %s185, %s186
      %p198 = scmp.eq.s32.totalorder %s29, 1
      %p199 = por %p197, %p198
      %p201 = scmp.ne.s32.totalorder %s186, %s200
      %p202 = scmp.eq.s32.totalorder %s29, 0
      %p203 = por %p201, %p202
      %s204 = ssub.s32 %s23, %s30
      %p205 = scmp.eq.s32.totalorder %s204, 0
      %s207 = sadd.s32 %s206, 1
      %s208 = scalar_select %p205, %s206, %s207
      %p211 = pneg %p205
      %p212 = scmp.eq.s32.totalorder %s23, 1
      %p213 = por %p211, %p212
      %p214 = scmp.ne.s32.totalorder %s206, %s209
      %p215 = scmp.eq.s32.totalorder %s23, 0
      %p216 = por %p214, %p215
      %p217 = scmp.ne.s32.totalorder %s206, %s209
      %p218 = scmp.eq.s32.totalorder %s28, 1
      %p219 = por %p217, %p218
      %p220 = scmp.ne.s32.totalorder %s209, %s210
      %p221 = scmp.eq.s32.totalorder %s28, 0
      %p222 = por %p220, %p221
      %p223 = scmp.ne.s32.totalorder %s209, %s210
      %p224 = scmp.eq.s32.totalorder %s29, 1
      %p225 = por %p223, %p224
      %p227 = scmp.ne.s32.totalorder %s210, %s226
      %p228 = scmp.eq.s32.totalorder %s29, 0
      %p229 = por %p227, %p228
      %s230 = ssub.s32 %s23, %s30
      %p231 = scmp.eq.s32.totalorder %s230, 0
      %s233 = sadd.s32 %s232, 1
      %s234 = scalar_select %p231, %s232, %s233
      %p237 = pneg %p231
      %p238 = scmp.eq.s32.totalorder %s23, 1
      %p239 = por %p237, %p238
      %p240 = scmp.ne.s32.totalorder %s232, %s235
      %p241 = scmp.eq.s32.totalorder %s23, 0
      %p242 = por %p240, %p241
      %p243 = scmp.ne.s32.totalorder %s232, %s235
      %p244 = scmp.eq.s32.totalorder %s28, 1
      %p245 = por %p243, %p244
      %p246 = scmp.ne.s32.totalorder %s235, %s236
      %p247 = scmp.eq.s32.totalorder %s28, 0
      %p248 = por %p246, %p247
      %p249 = scmp.ne.s32.totalorder %s235, %s236
      %p250 = scmp.eq.s32.totalorder %s29, 1
      %p251 = por %p249, %p250
      %p253 = scmp.ne.s32.totalorder %s236, %s252
      %p254 = scmp.eq.s32.totalorder %s29, 0
      %p255 = por %p253, %p254
      %p256 = scmp.le.s32.totalorder 1, %s23
      %p257 = scmp.lt.s32.totalorder %s23, 3
      %p258 = pnand %p256, %p257
      %p259 = pneg %p258
      // Predicated region
      $region9: #{tpu_custom_call.1} parent=5 // pred_check
        _
      $region10: #{tpu_custom_call.1} parent=5 // pred_check_branch
        %261 = sbr.rel (%p258) target = $region12
      $region11: #{tpu_custom_call.1} parent=5 // pred_region
        %s262 = ssub.s32 %s23, 1
        // Predicated region
        $region13: #{tpu_custom_call.1} parent=11 // pred_check
          %p263 = pneg %p70
        $region14: #{tpu_custom_call.1} parent=11 // pred_check_branch
          %265 = sbr.rel (%p263) target = $region16
        $region15: #{tpu_custom_call.1} parent=11 // pred_region
          _
        $region16: #{tpu_custom_call.1} parent=11 // pred_fallthru
          _
        // Predicated region
        $region17: #{tpu_custom_call.1} parent=11 // pred_check
          %p266 = pneg %p91
        $region18: #{tpu_custom_call.1} parent=11 // pred_check_branch
          %268 = sbr.rel (%p266) target = $region20
        $region19: #{tpu_custom_call.1} parent=11 // pred_region
          _
        $region20: #{tpu_custom_call.1} parent=11 // pred_fallthru
          _
        // Predicated region
        $region21: #{tpu_custom_call.1} parent=11 // pred_check
          %p269 = pneg %p112
        $region22: #{tpu_custom_call.1} parent=11 // pred_check_branch
          %271 = sbr.rel (%p269) target = $region24
        $region23: #{tpu_custom_call.1} parent=11 // pred_region
          _
        $region24: #{tpu_custom_call.1} parent=11 // pred_fallthru
          _
        // Predicated region
        $region25: #{tpu_custom_call.1} parent=11 // pred_check
          %p272 = pneg %p133
        $region26: #{tpu_custom_call.1} parent=11 // pred_check_branch
          %274 = sbr.rel (%p272) target = $region28
        $region27: #{tpu_custom_call.1} parent=11 // pred_region
          _
        $region28: #{tpu_custom_call.1} parent=11 // pred_fallthru
          _
        // Predicated region
        $region29: #{tpu_custom_call.1} parent=11 // pred_check
          %p275 = pneg %p154
        $region30: #{tpu_custom_call.1} parent=11 // pred_check_branch
          %277 = sbr.rel (%p275) target = $region32
        $region31: #{tpu_custom_call.1} parent=11 // pred_region
          %279 = vsyncadd [#allocation3], 0
          %s280 = sshll.u32 %s5, 4
          %s281 = int_to_ptr.hbm [resolvable:$true] %s280
          %s282 = sshll.u32 [#allocation2], 4
          %s283 = int_to_ptr.vmem [resolvable:$true] %s282
          %288 = dma.hbm_to_vmem [thread:$0]  %s281, 2048, %s283, [#allocation3], 128, 128, 8
        $region32: #{tpu_custom_call.1} parent=11 // pred_fallthru
          _
        // Predicated region
        $region33: #{tpu_custom_call.1} parent=11 // pred_check
          %p289 = pneg %p175
        $region34: #{tpu_custom_call.1} parent=11 // pred_check_branch
          %291 = sbr.rel (%p289) target = $region36
        $region35: #{tpu_custom_call.1} parent=11 // pred_region
          _
        $region36: #{tpu_custom_call.1} parent=11 // pred_fallthru
          _
        // Predicated region
        $region37: #{tpu_custom_call.1} parent=11 // pred_check
          %p292 = pneg %p196
        $region38: #{tpu_custom_call.1} parent=11 // pred_check_branch
          %294 = sbr.rel (%p292) target = $region40
        $region39: #{tpu_custom_call.1} parent=11 // pred_region
          _
        $region40: #{tpu_custom_call.1} parent=11 // pred_fallthru
          _
      $region12: #{tpu_custom_call.1} parent=5 // pred_fallthru
        _
      %p295 = scmp.lt.s32.totalorder %s23, 2
      // Predicated region
      $region41: #{tpu_custom_call.1} parent=5 // pred_check
        %p296 = pneg %p295
      $region42: #{tpu_custom_call.1} parent=5 // pred_check_branch
        %298 = sbr.rel (%p296) target = $region44
      $region43: #{tpu_custom_call.1} parent=5 // pred_region
        // Predicated region
        $region45: #{tpu_custom_call.1} parent=43 // pred_check
          %p299 = pneg %p43
        $region46: #{tpu_custom_call.1} parent=43 // pred_check_branch
          %301 = sbr.rel (%p299) target = $region48
        $region47: #{tpu_custom_call.1} parent=43 // pred_region
          %p302 = scmp.lt.s32.totalorder %s23, 1
          %s303 = scalar_select %p302, %s23, 1
          %s304 = smul.addr %s303, 8
          %s305 = scalar_lea.vmem %s0, %s304
        $region48: #{tpu_custom_call.1} parent=43 // pred_fallthru
          _
      $region44: #{tpu_custom_call.1} parent=5 // pred_fallthru
        _
      %p306 = scmp.le.s32.totalorder 1, %s23
      %p307 = scmp.lt.s32.totalorder %s23, 3
      %p308 = pnand %p306, %p307
      %p309 = pneg %p308
      // Predicated region
      $region49: #{tpu_custom_call.1} parent=5 // pred_check
        _
      $region50: #{tpu_custom_call.1} parent=5 // pred_check_branch
        %311 = sbr.rel (%p308) target = $region52
      $region51: #{tpu_custom_call.1} parent=5 // pred_region
        %s312 = ssub.s32 %s23, 1
        // Predicated region
        $region53: #{tpu_custom_call.1} parent=51 // pred_check
          %p313 = pneg %p154
        $region54: #{tpu_custom_call.1} parent=51 // pred_check_branch
          %315 = sbr.rel (%p313) target = $region56
        $region55: #{tpu_custom_call.1} parent=51 // pred_region
          %317 = dma.done [#allocation3], 2048
        $region56: #{tpu_custom_call.1} parent=51 // pred_fallthru
          _
        %p318 = scmp.lt.s32.totalorder %s28, 1
        %s319 = scalar_select %p318, %s28, 1
        %s320 = smul.addr %s319, 8
        %s321 = scalar_lea.vmem %s0, %s320
        %p322 = pneg %p49
        %p323 = pneg %p46
        %p324 = pneg %p70
        %p325 = pneg %p67
        %p326 = pneg %p91
        %p327 = pneg %p88
        %p328 = pneg %p112
        %p329 = pneg %p109
        %p330 = pneg %p133
        %p331 = pneg %p130
        %p332 = pneg %p154
        %p333 = pneg %p151
        %p334 = pneg %p175
        %p335 = pneg %p172
        %p336 = pneg %p196
        %p337 = pneg %p193
        %p338 = pneg %p222
        %p339 = pneg %p219
        %s340 = sand.u32 %s209, 1
        %s341 = scalar_lea.sflag [#allocation4], %s340
        %s342 = sand.u32 %s209, 1
        %s343 = smul.addr %s342, 8
        %s344 = scalar_lea.vmem [#allocation5], %s343
        %p345 = pneg %p248
        %p346 = pneg %p245
        %s347 = sand.u32 %s235, 1
        %s348 = scalar_lea.sflag [#allocation7], %s347
        %s349 = sand.u32 %s235, 1
        %s350 = smul.addr %s349, 8
        %s351 = scalar_lea.vmem [#allocation6], %s350
        %p352 = scmp.lt.s32.totalorder %s28, 1
        %s353 = scalar_select %p352, %s28, 1
        %s354 = smul.addr %s353, 8
        %s355 = scalar_lea.vmem %s0, %s354
        %v356 = vld [vmem:[%s7] sm:$0xff]
        %v357 = vld [vmem:[%s7 + $0x8] sm:$0xff]
        %v358 = vld [vmem:[%s355] sm:$0xff]
        %v359 = vld [vmem:[%s1] sm:$0xff]
        %v360 = vld [vmem:[%s1 + $0x8] sm:$0xff]
        %v361 = vld [vmem:[%s1 + $0x10] sm:$0xff]
        %v362 = vld [vmem:[%s1 + $0x18] sm:$0xff]
        %v363 = vld [vmem:[%s2] sm:$0xff]
        %v364 = vld [vmem:[%s2 + $0x8] sm:$0xff]
        %v365 = vld [vmem:[%s2 + $0x10] sm:$0xff]
        %v366 = vld [vmem:[%s2 + $0x18] sm:$0xff]
        %v367 = vld [vmem:[%s2 + $0x20] sm:$0xff]
        %v368 = vld [vmem:[%s2 + $0x28] sm:$0xff]
        %v369 = vld [vmem:[%s2 + $0x30] sm:$0xff]
        %v370 = vld [vmem:[%s2 + $0x38] sm:$0xff]
        %v371 = vld [vmem:[%s2 + $0x40] sm:$0xff]
        %v372 = vld [vmem:[%s2 + $0x48] sm:$0xff]
        %v373 = vld [vmem:[%s2 + $0x50] sm:$0xff]
        %v374 = vld [vmem:[%s2 + $0x58] sm:$0xff]
        %v375 = vld [vmem:[%s2 + $0x60] sm:$0xff]
        %v376 = vld [vmem:[%s2 + $0x68] sm:$0xff]
        %v377 = vld [vmem:[%s2 + $0x70] sm:$0xff]
        %v378 = vld [vmem:[%s2 + $0x78] sm:$0xff]
        %v379 = vld [vmem:[%s3] sm:$0xff]
        %v380 = vld [vmem:[%s3 + $0x8] sm:$0xff]
        %v381 = vld [vmem:[%s3 + $0x10] sm:$0xff]
        %v382 = vld [vmem:[%s3 + $0x18] sm:$0xff]
        %v383 = vld [vmem:[%s3 + $0x20] sm:$0xff]
        %v384 = vld [vmem:[%s3 + $0x28] sm:$0xff]
        %v385 = vld [vmem:[%s3 + $0x30] sm:$0xff]
        %v386 = vld [vmem:[%s3 + $0x38] sm:$0xff]
        %v387 = vld [vmem:[%s3 + $0x40] sm:$0xff]
        %v388 = vld [vmem:[%s3 + $0x48] sm:$0xff]
        %v389 = vld [vmem:[%s3 + $0x50] sm:$0xff]
        %v390 = vld [vmem:[%s3 + $0x58] sm:$0xff]
        %v391 = vld [vmem:[%s3 + $0x60] sm:$0xff]
        %v392 = vld [vmem:[%s3 + $0x68] sm:$0xff]
        %v393 = vld [vmem:[%s3 + $0x70] sm:$0xff]
        %v394 = vld [vmem:[%s3 + $0x78] sm:$0xff]
        %v395 = vperm.slane %v356, 0
        %vm396 = vcmask 261120
        %v398 = vsel %vm396, %v358, 0
        %400 = vmatpush.msra.mxu0 0.0
        %401 = vmatpush.msra.mxu0 0.0
        %402 = vmatpush.msra.mxu0 0.0
        %403 = vmatpush.msra.mxu0 0.0
        %404 = vmatpush.msra.mxu0 0.0
        %405 = vmatpush.msra.mxu0 0.0
        %406 = vmatpush.msra.mxu0 0.0
        %407 = vmatpush.msra.mxu0 0.0
        %408 = vmatpush.msra.mxu0 0.0
        %409 = vmatpush.msra.mxu0 0.0
        %410 = vmatpush.msra.mxu0 0.0
        %411 = vmatpush.msra.mxu0 0.0
        %412 = vmatpush.msra.mxu0 %v362
        %413 = vmatpush.msra.mxu0 %v361
        %414 = vmatpush.msra.mxu0 %v360
        %415 = vmatpush.msra.mxu0 %v359
        %416 = vmatmul.f32.gmra.mxu0 %v398
        %v417 = vpop.f32.mrf.mxu0
        %v418 = vadd.f32 %v395, %v417
        %419 = vdwg.mxu0
        %v420 = vmax.f32 %v418, 0.0
        %v421 = vperm.slane %v356, 1
        %422 = vmatpush.msra.mxu0 %v378
        %423 = vmatpush.msra.mxu0 %v377
        %424 = vmatpush.msra.mxu0 %v376
        %425 = vmatpush.msra.mxu0 %v375
        %426 = vmatpush.msra.mxu0 %v374
        %427 = vmatpush.msra.mxu0 %v373
        %428 = vmatpush.msra.mxu0 %v372
        %429 = vmatpush.msra.mxu0 %v371
        %430 = vmatpush.msra.mxu0 %v370
        %431 = vmatpush.msra.mxu0 %v369
        %432 = vmatpush.msra.mxu0 %v368
        %433 = vmatpush.msra.mxu0 %v367
        %434 = vmatpush.msra.mxu0 %v366
        %435 = vmatpush.msra.mxu0 %v365
        %436 = vmatpush.msra.mxu0 %v364
        %437 = vmatpush.msra.mxu0 %v363
        %438 = vmatmul.f32.gmra.mxu0 %v420
        %v439 = vpop.f32.mrf.mxu0
        %v440 = vadd.f32 %v421, %v439
        %441 = vdwg.mxu0
        %v442 = vmax.f32 %v440, 0.0
        %v443 = vperm.slane %v356, 2
        %v444 = vmul.f32 %v442, %v443
        %v445 = vperm.slane %v356, 3
        %v446 = vadd.f32 %v444, %v445
        %v447 = vperm.slane %v356, 4
        %448 = vmatpush.msra.mxu0 %v394
        %449 = vmatpush.msra.mxu0 %v393
        %450 = vmatpush.msra.mxu0 %v392
        %451 = vmatpush.msra.mxu0 %v391
        %452 = vmatpush.msra.mxu0 %v390
        %453 = vmatpush.msra.mxu0 %v389
        %454 = vmatpush.msra.mxu0 %v388
        %455 = vmatpush.msra.mxu0 %v387
        %456 = vmatpush.msra.mxu0 %v386
        %457 = vmatpush.msra.mxu0 %v385
        %458 = vmatpush.msra.mxu0 %v384
        %459 = vmatpush.msra.mxu0 %v383
        %460 = vmatpush.msra.mxu0 %v382
        %461 = vmatpush.msra.mxu0 %v381
        %462 = vmatpush.msra.mxu0 %v380
        %463 = vmatpush.msra.mxu0 %v379
        %464 = vmatmul.f32.gmra.mxu0 %v446
        %v465 = vpop.f32.mrf.mxu0
        %v466 = vadd.f32 %v447, %v465
        %467 = vdwg.mxu0
        %v468 = vld [vmem:[%s4] sm:$0xff]
        %v469 = vld [vmem:[%s4 + $0x8] sm:$0xff]
        %v470 = vld [vmem:[%s4 + $0x10] sm:$0xff]
        %v471 = vld [vmem:[%s4 + $0x18] sm:$0xff]
        %v472 = vld [vmem:[%s4 + $0x20] sm:$0xff]
        %v473 = vld [vmem:[%s4 + $0x28] sm:$0xff]
        %v474 = vld [vmem:[%s4 + $0x30] sm:$0xff]
        %v475 = vld [vmem:[%s4 + $0x38] sm:$0xff]
        %v476 = vld [vmem:[%s4 + $0x40] sm:$0xff]
        %v477 = vld [vmem:[%s4 + $0x48] sm:$0xff]
        %v478 = vld [vmem:[%s4 + $0x50] sm:$0xff]
        %v479 = vld [vmem:[%s4 + $0x58] sm:$0xff]
        %v480 = vld [vmem:[%s4 + $0x60] sm:$0xff]
        %v481 = vld [vmem:[%s4 + $0x68] sm:$0xff]
        %v482 = vld [vmem:[%s4 + $0x70] sm:$0xff]
        %v483 = vld [vmem:[%s4 + $0x78] sm:$0xff]
        %v484 = vld [vmem:[#allocation2] sm:$0xff]
        %v485 = vld [vmem:[#allocation2 + $0x8] sm:$0xff]
        %v486 = vld [vmem:[#allocation2 + $0x10] sm:$0xff]
        %v487 = vld [vmem:[#allocation2 + $0x18] sm:$0xff]
        %v488 = vld [vmem:[#allocation2 + $0x20] sm:$0xff]
        %v489 = vld [vmem:[#allocation2 + $0x28] sm:$0xff]
        %v490 = vld [vmem:[#allocation2 + $0x30] sm:$0xff]
        %v491 = vld [vmem:[#allocation2 + $0x38] sm:$0xff]
        %v492 = vld [vmem:[#allocation2 + $0x40] sm:$0xff]
        %v493 = vld [vmem:[#allocation2 + $0x48] sm:$0xff]
        %v494 = vld [vmem:[#allocation2 + $0x50] sm:$0xff]
        %v495 = vld [vmem:[#allocation2 + $0x58] sm:$0xff]
        %v496 = vld [vmem:[#allocation2 + $0x60] sm:$0xff]
        %v497 = vld [vmem:[#allocation2 + $0x68] sm:$0xff]
        %v498 = vld [vmem:[#allocation2 + $0x70] sm:$0xff]
        %v499 = vld [vmem:[#allocation2 + $0x78] sm:$0xff]
        %v500 = vld [vmem:[%s6] sm:$0xff]
        %v501 = vld [vmem:[%s6 + $0x8] sm:$0xff]
        %v502 = vld [vmem:[%s6 + $0x10] sm:$0xff]
        %v503 = vld [vmem:[%s6 + $0x18] sm:$0xff]
        %v504 = vld [vmem:[%s6 + $0x20] sm:$0xff]
        %v505 = vld [vmem:[%s6 + $0x28] sm:$0xff]
        %v506 = vld [vmem:[%s6 + $0x30] sm:$0xff]
        %v507 = vld [vmem:[%s6 + $0x38] sm:$0xff]
        %v508 = vld [vmem:[%s6 + $0x40] sm:$0xff]
        %v509 = vld [vmem:[%s6 + $0x48] sm:$0xff]
        %v510 = vld [vmem:[%s6 + $0x50] sm:$0xff]
        %v511 = vld [vmem:[%s6 + $0x58] sm:$0xff]
        %v512 = vld [vmem:[%s6 + $0x60] sm:$0xff]
        %v513 = vld [vmem:[%s6 + $0x68] sm:$0xff]
        %v514 = vld [vmem:[%s6 + $0x70] sm:$0xff]
        %v515 = vld [vmem:[%s6 + $0x78] sm:$0xff]
        %v516 = vperm.slane %v357, 0
        %517 = vmatpush.msra.mxu0 %v483
        %518 = vmatpush.msra.mxu0 %v482
        %519 = vmatpush.msra.mxu0 %v481
        %520 = vmatpush.msra.mxu0 %v480
        %521 = vmatpush.msra.mxu0 %v479
        %522 = vmatpush.msra.mxu0 %v478
        %523 = vmatpush.msra.mxu0 %v477
        %524 = vmatpush.msra.mxu0 %v476
        %525 = vmatpush.msra.mxu0 %v475
        %526 = vmatpush.msra.mxu0 %v474
        %527 = vmatpush.msra.mxu0 %v473
        %528 = vmatpush.msra.mxu0 %v472
        %529 = vmatpush.msra.mxu0 %v471
        %530 = vmatpush.msra.mxu0 %v470
        %531 = vmatpush.msra.mxu0 %v469
        %532 = vmatpush.msra.mxu0 %v468
        %533 = vmatmul.f32.gmra.mxu0 %v446
        %v534 = vpop.f32.mrf.mxu0
        %v535 = vadd.f32 %v516, %v534
        %536 = vdwg.mxu0
        %vm537 = vcmp.ge.f32.partialorder %v535, 0.0
        %v538 = vmul.f32 %v535, 0.01
        %v539 = vsel %vm537, %v535, %v538
        %v540 = vperm.slane %v357, 1
        %541 = vmatpush.msra.mxu0 %v499
        %542 = vmatpush.msra.mxu0 %v498
        %543 = vmatpush.msra.mxu0 %v497
        %544 = vmatpush.msra.mxu0 %v496
        %545 = vmatpush.msra.mxu0 %v495
        %546 = vmatpush.msra.mxu0 %v494
        %547 = vmatpush.msra.mxu0 %v493
        %548 = vmatpush.msra.mxu0 %v492
        %549 = vmatpush.msra.mxu0 %v491
        %550 = vmatpush.msra.mxu0 %v490
        %551 = vmatpush.msra.mxu0 %v489
        %552 = vmatpush.msra.mxu0 %v488
        %553 = vmatpush.msra.mxu0 %v487
        %554 = vmatpush.msra.mxu0 %v486
        %555 = vmatpush.msra.mxu0 %v485
        %556 = vmatpush.msra.mxu0 %v484
        %557 = vmatmul.f32.gmra.mxu0 %v539
        %v558 = vpop.f32.mrf.mxu0
        %v559 = vadd.f32 %v540, %v558
        %560 = vdwg.mxu0
        %vm561 = vcmp.ge.f32.partialorder %v559, 0.0
        %v562 = vmul.f32 %v559, 0.01
        %v563 = vsel %vm561, %v559, %v562
        %v564 = vperm.slane %v357, 2
        %v565 = vmul.f32 %v563, %v564
        %v566 = vperm.slane %v357, 3
        %v567 = vadd.f32 %v565, %v566
        %v568 = vperm.slane %v357, 4
        %569 = vmatpush.msra.mxu0 %v515
        %570 = vmatpush.msra.mxu0 %v514
        %571 = vmatpush.msra.mxu0 %v513
        %572 = vmatpush.msra.mxu0 %v512
        %573 = vmatpush.msra.mxu0 %v511
        %574 = vmatpush.msra.mxu0 %v510
        %575 = vmatpush.msra.mxu0 %v509
        %576 = vmatpush.msra.mxu0 %v508
        %577 = vmatpush.msra.mxu0 %v507
        %578 = vmatpush.msra.mxu0 %v506
        %579 = vmatpush.msra.mxu0 %v505
        %580 = vmatpush.msra.mxu0 %v504
        %581 = vmatpush.msra.mxu0 %v503
        %582 = vmatpush.msra.mxu0 %v502
        %583 = vmatpush.msra.mxu0 %v501
        %584 = vmatpush.msra.mxu0 %v500
        %585 = vmatmul.f32.gmra.mxu0 %v567
        %v586 = vpop.f32.mrf.mxu0
        %v587 = vadd.f32 %v568, %v586
        %588 = vdwg.mxu0
        %vm589 = vcmask 523264
        %590 = vst.msk [vmem:[%s344] sm:$0xff] %vm589, %v466
        %592 = vrot.lane.b32.xlu0 %v587, 64
        %v593 = vpop.permute.xlu0 %592
        %vm595 = vcmask 1048064
        %596 = vst.msk [vmem:[%s344] sm:$0xff] %vm595, %v593
        %597 = vst [vmem:[%s351] sm:$0xff] %v446
        %s598 = sand.u32 %s209, 1
        %s599 = scalar_lea.sflag [#allocation4], %s598
        %s600 = sand.u32 %s209, 1
        %s601 = smul.addr %s600, 8
        %s602 = scalar_lea.vmem [#allocation5], %s601
        %s603 = sand.u32 %s235, 1
        %s604 = scalar_lea.sflag [#allocation7], %s603
        %s605 = sand.u32 %s235, 1
        %s606 = smul.addr %s605, 8
        %s607 = scalar_lea.vmem [#allocation6], %s606
        // Predicated region
        $region57: #{tpu_custom_call.1} parent=51 // pred_check
          %p608 = pneg %p219
        $region58: #{tpu_custom_call.1} parent=51 // pred_check_branch
          %610 = sbr.rel (%p608) target = $region60
        $region59: #{tpu_custom_call.1} parent=51 // pred_region
          %612 = vsyncadd %s599, 0
          %s613 = smul.addr %s28, 8
          %s614 = scalar_lea.hbm %s8, %s613
          %s616 = sshll.u32 %s602, 4
          %s617 = int_to_ptr.vmem [resolvable:$true] %s616
          %s618 = sshll.u32 %s614, 4
          %s619 = int_to_ptr.hbm [resolvable:$true] %s618
          %621 = dma.vmem_to_hbm [thread:$0]  %s617, 128, %s619, %s599
        $region60: #{tpu_custom_call.1} parent=51 // pred_fallthru
          _
        // Predicated region
        $region61: #{tpu_custom_call.1} parent=51 // pred_check
          %p622 = pneg %p245
        $region62: #{tpu_custom_call.1} parent=51 // pred_check_branch
          %624 = sbr.rel (%p622) target = $region64
        $region63: #{tpu_custom_call.1} parent=51 // pred_region
          %626 = vsyncadd %s604, 0
          %s627 = smul.addr %s28, 8
          %s628 = scalar_lea.hbm %s9, %s627
          %s630 = sshll.u32 %s607, 4
          %s631 = int_to_ptr.vmem [resolvable:$true] %s630
          %s632 = sshll.u32 %s628, 4
          %s633 = int_to_ptr.hbm [resolvable:$true] %s632
          %635 = dma.vmem_to_hbm [thread:$0]  %s631, 128, %s633, %s604
        $region64: #{tpu_custom_call.1} parent=51 // pred_fallthru
          _
      $region52: #{tpu_custom_call.1} parent=5 // pred_fallthru
        _
      %p636 = scmp.le.s32.totalorder 2, %s23
      // Predicated region
      $region65: #{tpu_custom_call.1} parent=5 // pred_check
        %p637 = pneg %p636
      $region66: #{tpu_custom_call.1} parent=5 // pred_check_branch
        %639 = sbr.rel (%p637) target = $region68
      $region67: #{tpu_custom_call.1} parent=5 // pred_region
        %s640 = ssub.s32 %s23, 2
        // Predicated region
        $region69: #{tpu_custom_call.1} parent=67 // pred_check
          %p641 = pneg %p225
        $region70: #{tpu_custom_call.1} parent=67 // pred_check_branch
          %643 = sbr.rel (%p641) target = $region72
        $region71: #{tpu_custom_call.1} parent=67 // pred_region
          %s644 = sand.u32 %s210, 1
          %s645 = scalar_lea.sflag [#allocation4], %s644
          %s646 = sand.u32 %s210, 1
          %s647 = smul.addr %s646, 8
          %s648 = scalar_lea.vmem [#allocation5], %s647
          %650 = dma.done %s645, 128
        $region72: #{tpu_custom_call.1} parent=67 // pred_fallthru
          _
        // Predicated region
        $region73: #{tpu_custom_call.1} parent=67 // pred_check
          %p651 = pneg %p251
        $region74: #{tpu_custom_call.1} parent=67 // pred_check_branch
          %653 = sbr.rel (%p651) target = $region76
        $region75: #{tpu_custom_call.1} parent=67 // pred_region
          %s654 = sand.u32 %s236, 1
          %s655 = scalar_lea.sflag [#allocation7], %s654
          %s656 = sand.u32 %s236, 1
          %s657 = smul.addr %s656, 8
          %s658 = scalar_lea.vmem [#allocation6], %s657
          %660 = dma.done %s655, 128
        $region76: #{tpu_custom_call.1} parent=67 // pred_fallthru
          _
      $region68: #{tpu_custom_call.1} parent=5 // pred_fallthru
        _
    $region6: #{tpu_custom_call.1} parent=1 // loop_footer
      %s27 = sadd.s32 1, %s23
    $region7: #{tpu_custom_call.1} parent=1 // loop_footer_branch
      %22 = sbr.rel target = $region3
    $region8: #{tpu_custom_call.1} parent=1 // loop_exit
      _
    %661 = vsyncpa [#allocation3], 1
    %s662 = scalar_lea.sflag [#allocation3], 1
    %663 = vsyncpa %s662, 1
    %664 = vsyncpa [#allocation4], 1
    %s665 = scalar_lea.sflag [#allocation4], 1
    %666 = vsyncpa %s665, 1
    %667 = vsyncpa [#allocation7], 1
    %s668 = scalar_lea.sflag [#allocation7], 1
    %669 = vsyncpa %s668, 1

</llo_original>
